<compile_context>
chip_gen: v5e
topology: v5e:2x2
jax: 0.10.0
libtpu: 0.0.40
codegen_flags: <defaults>
</compile_context>

<pallas_src>
import math
import jax
import jax.numpy as jnp
from jax.experimental import pallas as pl
from jax.experimental.pallas import tpu as pltpu


def _decoder_kernel(x_ref, w1_ref, b1_ref, w2_ref, b2_ref, w3_ref, b3_ref, o_ref):
    cdt = w1_ref.dtype  # MXU input dtype (bf16 or f32); accumulation always f32.

    # Layer 1: Linear (MXU) + bias-add (VPU, f32) + tanh (EUP, f32)
    h = jnp.dot(x_ref[...].astype(cdt), w1_ref[...],
                preferred_element_type=jnp.float32)
    h = jnp.tanh(h + b1_ref[...])
    # Layer 2
    h = jnp.dot(h.astype(cdt), w2_ref[...], preferred_element_type=jnp.float32)
    h = jnp.tanh(h + b2_ref[...])
    # Layer 3 (output columns zero-padded to a lane-dense width; padded columns
    # yield tanh(0 + 0) = 0 and are sliced off in the wrapper).
    h = jnp.dot(h.astype(cdt), w3_ref[...], preferred_element_type=jnp.float32)
    o_ref[...] = jnp.tanh(h + b3_ref[...]).astype(o_ref.dtype)


def prepare_params(params, param_dtype=jnp.bfloat16):
    """One-off padding / dtype casts for the kernel. Call once, reuse per step."""
    w1, b1 = params["w1"], params["b1"]
    w2, b2 = params["w2"], params["b2"]
    w3, b3 = params["w3"], params["b3"]

    out_dim = w3.shape[1]
    out_pad = max(128, ((out_dim + 127) // 128) * 128)  # lane-dense output width
    if out_pad != out_dim:
        w3 = jnp.pad(w3, ((0, 0), (0, out_pad - out_dim)))
        b3 = jnp.pad(b3, ((0, 0), (0, out_pad - out_dim)))

    prepared = {
        "w1": w1.astype(param_dtype), "b1": b1.astype(jnp.float32),
        "w2": w2.astype(param_dtype), "b2": b2.astype(jnp.float32),
        "w3": w3.astype(param_dtype), "b3": b3.astype(jnp.float32),
    }
    return prepared, out_dim, out_pad


def decoder_forward(x, prepared, out_dim, out_pad, *, block_b=1024):
    """Forward pass with pre-prepared params. x: [B, input_layer] float32."""
    w1, b1 = prepared["w1"], prepared["b1"]
    w2, b2 = prepared["w2"], prepared["b2"]
    w3, b3 = prepared["w3"], prepared["b3"]

    B, d_in = x.shape

    # Batch tiling: TB rows per grid step; pad B so every block is full.
    TB = B if B <= block_b else block_b
    n_blocks = pl.cdiv(B, TB)
    B_pad = n_blocks * TB
    if B_pad != B:
        x = jnp.pad(x, ((0, B_pad - B), (0, 0)))

    w_spec = lambda arr: pl.BlockSpec(arr.shape, lambda i: (0, 0))  # VMEM-resident

    out = pl.pallas_call(
        _decoder_kernel,
        out_shape=jax.ShapeDtypeStruct((B_pad, out_pad), jnp.float32),
        grid=(n_blocks,),
        in_specs=[
            pl.BlockSpec((TB, d_in), lambda i: (i, 0)),   # x tile, pipelined
            w_spec(w1), w_spec(b1),
            w_spec(w2), w_spec(b2),
            w_spec(w3), w_spec(b3),
        ],
        out_specs=pl.BlockSpec((TB, out_pad), lambda i: (i, 0)),
        compiler_params=pltpu.CompilerParams(
            dimension_semantics=("parallel",),            # 2x on v7x's 2 TCs
        ),
    )(x, w1, b1, w2, b2, w3, b3)

    return out[:B, :out_dim]


def multilayer_decoder(x, params, *, block_b=1024, param_dtype=jnp.bfloat16):
    """Convenience one-shot wrapper (prepares params then runs the kernel)."""
    prepared, out_dim, out_pad = prepare_params(params, param_dtype)
    return decoder_forward(x, prepared, out_dim, out_pad, block_b=block_b)


def init_params(key, input_layer, middle_layer1, middle_layer2, output_layer):
    """Deterministic init mimicking PyTorch nn.Linear default U(-1/sqrt(fan_in), +)."""
    def linear_init(k, fan_in, fan_out):
        kw, kb = jax.random.split(k)
        bound = 1.0 / math.sqrt(fan_in)
        w = jax.random.uniform(kw, (fan_in, fan_out), jnp.float32, -bound, bound)
        b = jax.random.uniform(kb, (1, fan_out), jnp.float32, -bound, bound)
        return w, b

    k1, k2, k3 = jax.random.split(key, 3)
    w1, b1 = linear_init(k1, input_layer, middle_layer1)
    w2, b2 = linear_init(k2, middle_layer1, middle_layer2)
    w3, b3 = linear_init(k3, middle_layer2, output_layer)
    return {"w1": w1, "b1": b1, "w2": w2, "b2": b2, "w3": w3, "b3": b3}


def reference(x, p, compute_dtype=jnp.float32):
    """Pure-JAX reference with matching dtype semantics (matmul inputs in
    compute_dtype, f32 accumulation, f32 bias+tanh)."""
    def layer(h, w, b):
        y = jnp.dot(h.astype(compute_dtype), w.astype(compute_dtype),
                    preferred_element_type=jnp.float32)
        return jnp.tanh(y + b.astype(jnp.float32))
    h = layer(x, p["w1"], p["b1"])
    h = layer(h, p["w2"], p["b2"])
    return layer(h, p["w3"], p["b3"])


if __name__ == "__main__":
    key = jax.random.PRNGKey(0)
    k_param, k_x, k_xb = jax.random.split(key, 3)

    # MultiLayerDecoder(input_layer=32, middle_layer1=64, middle_layer2=48, output_layer=16)
    input_layer, middle_layer1, middle_layer2, output_layer = 32, 64, 48, 16
    params = init_params(k_param, input_layer, middle_layer1, middle_layer2, output_layer)

    # --- small batch (B=2): single grid point, bf16 MXU path.
    x = jax.random.normal(k_x, (2, input_layer), jnp.float32)
    out = jax.block_until_ready(multilayer_decoder(x, params))
    ref = reference(x, params, compute_dtype=jnp.bfloat16)
    assert out.shape == (2, output_layer)
    assert jnp.allclose(out, ref, atol=2e-3, rtol=2e-3), "bf16-path mismatch vs reference"

    # --- f32 path sanity check (exact semantics of the original PyTorch module).
    out_f32 = jax.block_until_ready(multilayer_decoder(x, params, param_dtype=jnp.float32))
    ref_f32 = reference(x, params, compute_dtype=jnp.float32)
    assert jnp.allclose(out_f32, ref_f32, atol=1e-4, rtol=1e-4), "f32-path mismatch vs reference"

    # --- larger batch exercises the 1-D batch grid with reused prepared params
    #     (weights VMEM-resident, batch axis "parallel", lane-dense 128-wide
    #     stores, 1024-row tiles, 512-row trailing tile via batch padding).
    prepared, out_dim, out_pad = prepare_params(params)
    xb = jax.random.normal(k_xb, (1536, input_layer), jnp.float32)
    outb = jax.block_until_ready(decoder_forward(xb, prepared, out_dim, out_pad))
    refb = reference(xb, params, compute_dtype=jnp.bfloat16)
    assert outb.shape == (1536, output_layer)
    assert jnp.allclose(outb, refb, atol=2e-3, rtol=2e-3), "batched bf16-path mismatch"

    print("KERNEL_OK")
</pallas_src>

<mosaic_0001>
module attributes {stable_mosaic.version = 11 : i64} {
  func.func @_decoder_kernel(%arg0: i32, %arg1: memref<2x32xf32, #tpu.memory_space<vmem>>, %arg2: memref<32x64xbf16, #tpu.memory_space<vmem>>, %arg3: memref<1x64xf32, #tpu.memory_space<vmem>>, %arg4: memref<64x48xbf16, #tpu.memory_space<vmem>>, %arg5: memref<1x48xf32, #tpu.memory_space<vmem>>, %arg6: memref<48x128xbf16, #tpu.memory_space<vmem>>, %arg7: memref<1x128xf32, #tpu.memory_space<vmem>>, %arg8: memref<2x128xf32, #tpu.memory_space<vmem>>) attributes {dimension_semantics = [#tpu.dimension_semantics<parallel>], iteration_bounds = array<i64: 1>, scalar_prefetch = 0 : i64, scratch_operands = 0 : i64, tpu.core_type = #tpu.core_type<tc>, window_params = [{transform_indices = @transform_0, window_bounds = array<i64: 2, 32>}, {pipeline_mode = #tpu.pipeline_mode<synchronous>, transform_indices = @transform_1, window_bounds = array<i64: 32, 64>}, {pipeline_mode = #tpu.pipeline_mode<synchronous>, transform_indices = @transform_2, window_bounds = array<i64: 1, 64>}, {pipeline_mode = #tpu.pipeline_mode<synchronous>, transform_indices = @transform_3, window_bounds = array<i64: 64, 48>}, {pipeline_mode = #tpu.pipeline_mode<synchronous>, transform_indices = @transform_4, window_bounds = array<i64: 1, 48>}, {pipeline_mode = #tpu.pipeline_mode<synchronous>, transform_indices = @transform_5, window_bounds = array<i64: 48, 128>}, {pipeline_mode = #tpu.pipeline_mode<synchronous>, transform_indices = @transform_6, window_bounds = array<i64: 1, 128>}, {transform_indices = @transform_7, window_bounds = array<i64: 2, 128>}]} {
    %c0 = arith.constant 0 : index
    %c0_0 = arith.constant 0 : index
    %0 = vector.load %arg1[%c0, %c0_0] : memref<2x32xf32, #tpu.memory_space<vmem>>, vector<2x32xf32>
    %1 = arith.truncf %0 : vector<2x32xf32> to vector<2x32xbf16>
    %c0_1 = arith.constant 0 : index
    %c0_2 = arith.constant 0 : index
    %2 = vector.load %arg2[%c0_1, %c0_2] : memref<32x64xbf16, #tpu.memory_space<vmem>>, vector<32x64xbf16>
    %cst = arith.constant dense<0.000000e+00> : vector<2x64xf32>
    %3 = tpu.matmul %1, %2, %cst {dimension_numbers = #tpu.dot_dimension_numbers<[1], [0], [0], [1], [0, 0, 1, 1], [], []>} : vector<2x32xbf16>, vector<32x64xbf16>, vector<2x64xf32> -> vector<2x64xf32>
    %c0_3 = arith.constant 0 : index
    %c0_4 = arith.constant 0 : index
    %4 = vector.load %arg3[%c0_3, %c0_4] : memref<1x64xf32, #tpu.memory_space<vmem>>, vector<1x64xf32>
    %5 = vector.broadcast %4 : vector<1x64xf32> to vector<2x64xf32>
    %6 = arith.addf %3, %5 : vector<2x64xf32>
    %7 = math.tanh %6 : vector<2x64xf32>
    %8 = arith.truncf %7 : vector<2x64xf32> to vector<2x64xbf16>
    %c0_5 = arith.constant 0 : index
    %c0_6 = arith.constant 0 : index
    %9 = vector.load %arg4[%c0_5, %c0_6] : memref<64x48xbf16, #tpu.memory_space<vmem>>, vector<64x48xbf16>
    %cst_7 = arith.constant dense<0.000000e+00> : vector<2x48xf32>
    %10 = tpu.matmul %8, %9, %cst_7 {dimension_numbers = #tpu.dot_dimension_numbers<[1], [0], [0], [1], [0, 0, 1, 1], [], []>} : vector<2x64xbf16>, vector<64x48xbf16>, vector<2x48xf32> -> vector<2x48xf32>
    %c0_8 = arith.constant 0 : index
    %c0_9 = arith.constant 0 : index
    %11 = vector.load %arg5[%c0_8, %c0_9] : memref<1x48xf32, #tpu.memory_space<vmem>>, vector<1x48xf32>
    %12 = vector.broadcast %11 : vector<1x48xf32> to vector<2x48xf32>
    %13 = arith.addf %10, %12 : vector<2x48xf32>
    %14 = math.tanh %13 : vector<2x48xf32>
    %15 = arith.truncf %14 : vector<2x48xf32> to vector<2x48xbf16>
    %c0_10 = arith.constant 0 : index
    %c0_11 = arith.constant 0 : index
    %16 = vector.load %arg6[%c0_10, %c0_11] : memref<48x128xbf16, #tpu.memory_space<vmem>>, vector<48x128xbf16>
    %cst_12 = arith.constant dense<0.000000e+00> : vector<2x128xf32>
    %17 = tpu.matmul %15, %16, %cst_12 {dimension_numbers = #tpu.dot_dimension_numbers<[1], [0], [0], [1], [0, 0, 1, 1], [], []>} : vector<2x48xbf16>, vector<48x128xbf16>, vector<2x128xf32> -> vector<2x128xf32>
    %c0_13 = arith.constant 0 : index
    %c0_14 = arith.constant 0 : index
    %18 = vector.load %arg7[%c0_13, %c0_14] : memref<1x128xf32, #tpu.memory_space<vmem>>, vector<1x128xf32>
    %19 = vector.broadcast %18 : vector<1x128xf32> to vector<2x128xf32>
    %20 = arith.addf %17, %19 : vector<2x128xf32>
    %21 = math.tanh %20 : vector<2x128xf32>
    %c0_15 = arith.constant 0 : index
    %c0_16 = arith.constant 0 : index
    %22 = vector.load %arg8[%c0_15, %c0_16] : memref<2x128xf32, #tpu.memory_space<vmem>>, vector<2x128xf32>
    tpu.vector_store %arg8[%c0_15, %c0_16], %21 {strides = array<i32>} : memref<2x128xf32, #tpu.memory_space<vmem>>, vector<2x128xf32>,
    return
  }
  func.func @transform_0(%arg0: i32) -> (i32, i32) {
    %c0_i32 = arith.constant 0 : i32
    %c0_i32_0 = arith.constant 0 : i32
    return %arg0, %c0_i32 : i32, i32
  }
  func.func @transform_1(%arg0: i32) -> (i32, i32) {
    %c0_i32 = arith.constant 0 : i32
    %c0_i32_0 = arith.constant 0 : i32
    %c0_i32_1 = arith.constant 0 : i32
    return %c0_i32, %c0_i32_0 : i32, i32
  }
  func.func @transform_2(%arg0: i32) -> (i32, i32) {
    %c0_i32 = arith.constant 0 : i32
    %c0_i32_0 = arith.constant 0 : i32
    %c0_i32_1 = arith.constant 0 : i32
    return %c0_i32, %c0_i32_0 : i32, i32
  }
  func.func @transform_3(%arg0: i32) -> (i32, i32) {
    %c0_i32 = arith.constant 0 : i32
    %c0_i32_0 = arith.constant 0 : i32
    %c0_i32_1 = arith.constant 0 : i32
    return %c0_i32, %c0_i32_0 : i32, i32
  }
  func.func @transform_4(%arg0: i32) -> (i32, i32) {
    %c0_i32 = arith.constant 0 : i32
    %c0_i32_0 = arith.constant 0 : i32
    %c0_i32_1 = arith.constant 0 : i32
    return %c0_i32, %c0_i32_0 : i32, i32
  }
  func.func @transform_5(%arg0: i32) -> (i32, i32) {
    %c0_i32 = arith.constant 0 : i32
    %c0_i32_0 = arith.constant 0 : i32
    %c0_i32_1 = arith.constant 0 : i32
    return %c0_i32, %c0_i32_0 : i32, i32
  }
  func.func @transform_6(%arg0: i32) -> (i32, i32) {
    %c0_i32 = arith.constant 0 : i32
    %c0_i32_0 = arith.constant 0 : i32
    %c0_i32_1 = arith.constant 0 : i32
    return %c0_i32, %c0_i32_0 : i32, i32
  }
  func.func @transform_7(%arg0: i32) -> (i32, i32) {
    %c0_i32 = arith.constant 0 : i32
    %c0_i32_0 = arith.constant 0 : i32
    return %arg0, %c0_i32 : i32, i32
  }
}

</mosaic_0001>

<llo_original>
// kernel: tpu_custom_call.1
$region0: #{tpu_custom_call.1}
  #allocation0 [shape = 'u32[]', space=smem, size = 0x4, offset = 0x4, fixed_abs, tag = 'smem constant byte address 0x4 - core index']
  #allocation1 [shape = 'u32[72,128]{1,0:T(1,128)}', space=vmem, size = 0x9000, scoped, tag = 'internal scratch']
  %s0 = inlined_call_operand.vmem [shape: f32[2,32], index: 0, kind: input, shape index: {}]
  %s1 = inlined_call_operand.vmem [shape: bf16[32,64], index: 1, kind: input, shape index: {}]
  %s2 = inlined_call_operand.vmem [shape: f32[1,64], index: 2, kind: input, shape index: {}]
  %s3 = inlined_call_operand.vmem [shape: bf16[64,48], index: 3, kind: input, shape index: {}]
  %s4 = inlined_call_operand.vmem [shape: f32[1,48], index: 4, kind: input, shape index: {}]
  %s5 = inlined_call_operand.vmem [shape: bf16[48,128], index: 5, kind: input, shape index: {}]
  %s6 = inlined_call_operand.vmem [shape: f32[1,128], index: 6, kind: input, shape index: {}]
  %s7 = inlined_call_operand.hbm [shape: f32[2,128], index: 7, kind: output, shape index: {}]
  %s8 = sld [smem:[#allocation0]]
  $region38: #{tpu_custom_call.1} parent=0
    _
  %s10 = ssub.s32 1, %s8
  %s11 = scalar_select 0, %s10, %s8
  $region1: #{tpu_custom_call.1} parent=0
    #allocation2 [shape = 'u8[1024]{0}', space=vmem, size = 0x400, scoped, tag = 'output window, operand 0, single buffered']
    #allocation3 [shape = 's32[1]{0}', space=sflag, size = 0x4, scoped, tag = 'scoped memory for tpu_custom_call.1']
    %12 = vsyncpa [#allocation3], 0
    // Predicated region
    $region2: #{tpu_custom_call.1} parent=1 // pred_check
      _
    $region3: #{tpu_custom_call.1} parent=1 // pred_check_branch
      %14 = sbr.rel (0) target = $region5
    $region4: #{tpu_custom_call.1} parent=1 // pred_region
      _
    $region5: #{tpu_custom_call.1} parent=1 // pred_fallthru
      _
    // Predicated region
    $region6: #{tpu_custom_call.1} parent=1 // pred_check
      _
    $region7: #{tpu_custom_call.1} parent=1 // pred_check_branch
      %16 = sbr.rel (0) target = $region9
    $region8: #{tpu_custom_call.1} parent=1 // pred_region
      _
    $region9: #{tpu_custom_call.1} parent=1 // pred_fallthru
      _
    // Predicated region
    $region10: #{tpu_custom_call.1} parent=1 // pred_check
      _
    $region11: #{tpu_custom_call.1} parent=1 // pred_check_branch
      %18 = sbr.rel (0) target = $region13
    $region12: #{tpu_custom_call.1} parent=1 // pred_region
      _
    $region13: #{tpu_custom_call.1} parent=1 // pred_fallthru
      _
    // Predicated region
    $region14: #{tpu_custom_call.1} parent=1 // pred_check
      _
    $region15: #{tpu_custom_call.1} parent=1 // pred_check_branch
      %20 = sbr.rel (0) target = $region17
    $region16: #{tpu_custom_call.1} parent=1 // pred_region
      _
    $region17: #{tpu_custom_call.1} parent=1 // pred_fallthru
      _
    // Predicated region
    $region18: #{tpu_custom_call.1} parent=1 // pred_check
      _
    $region19: #{tpu_custom_call.1} parent=1 // pred_check_branch
      %22 = sbr.rel (0) target = $region21
    $region20: #{tpu_custom_call.1} parent=1 // pred_region
      _
    $region21: #{tpu_custom_call.1} parent=1 // pred_fallthru
      _
    // Predicated region
    $region22: #{tpu_custom_call.1} parent=1 // pred_check
      _
    $region23: #{tpu_custom_call.1} parent=1 // pred_check_branch
      %24 = sbr.rel (0) target = $region25
    $region24: #{tpu_custom_call.1} parent=1 // pred_region
      _
    $region25: #{tpu_custom_call.1} parent=1 // pred_fallthru
      _
    // Predicated region
    $region26: #{tpu_custom_call.1} parent=1 // pred_check
      _
    $region27: #{tpu_custom_call.1} parent=1 // pred_check_branch
      %26 = sbr.rel (0) target = $region29
    $region28: #{tpu_custom_call.1} parent=1 // pred_region
      _
    $region29: #{tpu_custom_call.1} parent=1 // pred_fallthru
      _
    %v28 = vld [vmem:[%s0] sm:$0x3]
    %v29 = vpack.c.bf16 %v28, %v28
    %v30 = vld [vmem:[%s1] sm:$0xf]
    %v31 = vld [vmem:[%s1 + $0x4] sm:$0xf]
    %v32 = vld [vmem:[%s1 + $0x8] sm:$0xf]
    %v33 = vld [vmem:[%s1 + $0xc] sm:$0xf]
    %v34 = vld [vmem:[%s2] sm:$0x1]
    %v36 = vperm.slane %v34, 0
    %v42 = vunpack.c.l.b16 %v30
    %v43 = vunpack.c.l.b16 %v31
    %v44 = vunpack.c.l.b16 %v32
    %v45 = vunpack.c.l.b16 %v33
    %v46 = vpack.c.b16 %v43, %v42
    %v47 = vpack.c.b16 %v45, %v44
    %vm50 = vcmask 261120
    %v52 = vsel %vm50, %v29, 0
    %54 = vmatpush.bf16.msra.mxu0 0
    %55 = vmatpush.bf16.msra.mxu0 0
    %56 = vmatpush.bf16.msra.mxu0 0
    %57 = vmatpush.bf16.msra.mxu0 0
    %58 = vmatpush.bf16.msra.mxu0 0
    %59 = vmatpush.bf16.msra.mxu0 0
    %60 = vmatpush.bf16.msra.mxu0 %v47
    %61 = vmatpush.bf16.msra.mxu0 %v46
    %62 = vmatmul.bf16.gmra.mxu0 %v52
    %v63 = vpop.f32.mrf.mxu0
    %v64 = vadd.f32 %v36, %v63
    %v65 = vpop.f32.mrf.mxu0
    %66 = vdwg.mxu0
    %v67 = vtanh.pop %v64
    %v68 = vpack.c.bf16 %v67, %v67
    %v69 = vld [vmem:[%s3] sm:$0xf]
    %v70 = vld [vmem:[%s3 + $0x4] sm:$0xf]
    %v71 = vld [vmem:[%s3 + $0x8] sm:$0xf]
    %v72 = vld [vmem:[%s3 + $0xc] sm:$0xf]
    %v73 = vld [vmem:[%s3 + $0x10] sm:$0xf]
    %v74 = vld [vmem:[%s3 + $0x14] sm:$0xf]
    %v75 = vld [vmem:[%s3 + $0x18] sm:$0xf]
    %v76 = vld [vmem:[%s3 + $0x1c] sm:$0xf]
    %v77 = vld [vmem:[%s4] sm:$0x1]
    %v79 = vperm.slane %v77, 0
    %v89 = vunpack.c.l.b16 %v69
    %v90 = vunpack.c.l.b16 %v70
    %v91 = vunpack.c.l.b16 %v71
    %v92 = vunpack.c.l.b16 %v72
    %v93 = vunpack.c.l.b16 %v73
    %v94 = vunpack.c.l.b16 %v74
    %v95 = vunpack.c.l.b16 %v75
    %v96 = vunpack.c.l.b16 %v76
    %v97 = vpack.c.b16 %v90, %v89
    %v98 = vpack.c.b16 %v92, %v91
    %v99 = vpack.c.b16 %v94, %v93
    %v100 = vpack.c.b16 %v96, %v95
    %vm105 = vcmask 523264
    %v107 = vsel %vm105, %v68, 0
    %109 = vmatpush.bf16.msra.mxu0 0
    %110 = vmatpush.bf16.msra.mxu0 0
    %111 = vmatpush.bf16.msra.mxu0 0
    %112 = vmatpush.bf16.msra.mxu0 0
    %113 = vmatpush.bf16.msra.mxu0 %v100
    %114 = vmatpush.bf16.msra.mxu0 %v99
    %115 = vmatpush.bf16.msra.mxu0 %v98
    %116 = vmatpush.bf16.msra.mxu0 %v97
    %117 = vmatmul.bf16.gmra.mxu0 %v107
    %v118 = vpop.f32.mrf.mxu0
    %v119 = vadd.f32 %v79, %v118
    %v120 = vpop.f32.mrf.mxu0
    %121 = vdwg.mxu0
    %v122 = vtanh.pop %v119
    %v123 = vpack.c.bf16 %v122, %v122
    %v124 = vld [vmem:[%s5] sm:$0xf]
    %v125 = vld [vmem:[%s5 + $0x4] sm:$0xf]
    %v126 = vld [vmem:[%s5 + $0x8] sm:$0xf]
    %v127 = vld [vmem:[%s5 + $0xc] sm:$0xf]
    %v128 = vld [vmem:[%s5 + $0x10] sm:$0xf]
    %v129 = vld [vmem:[%s5 + $0x14] sm:$0xf]
    %v130 = vld [vmem:[%s6] sm:$0x1]
    %v132 = vperm.slane %v130, 0
    %v140 = vunpack.c.l.b16 %v124
    %v141 = vunpack.c.l.b16 %v125
    %v142 = vunpack.c.l.b16 %v126
    %v143 = vunpack.c.l.b16 %v127
    %v144 = vunpack.c.l.b16 %v128
    %v145 = vunpack.c.l.b16 %v129
    %v146 = vpack.c.b16 %v141, %v140
    %v147 = vpack.c.b16 %v143, %v142
    %v148 = vpack.c.b16 %v145, %v144
    %vm152 = vcmask 392192
    %v154 = vsel %vm152, %v123, 0
    %156 = vmatpush.bf16.msra.mxu0 0
    %157 = vmatpush.bf16.msra.mxu0 0
    %158 = vmatpush.bf16.msra.mxu0 0
    %159 = vmatpush.bf16.msra.mxu0 0
    %160 = vmatpush.bf16.msra.mxu0 0
    %161 = vmatpush.bf16.msra.mxu0 %v148
    %162 = vmatpush.bf16.msra.mxu0 %v147
    %163 = vmatpush.bf16.msra.mxu0 %v146
    %164 = vmatmul.bf16.gmra.mxu0 %v154
    %v165 = vpop.f32.mrf.mxu0
    %v166 = vadd.f32 %v132, %v165
    %v167 = vpop.f32.mrf.mxu0
    %168 = vdwg.mxu0
    %v169 = vtanh.pop %v166
    %170 = vst [vmem:[#allocation2] sm:$0x3] %v169
    // Predicated region
    $region30: #{tpu_custom_call.1} parent=1 // pred_check
      _
    $region31: #{tpu_custom_call.1} parent=1 // pred_check_branch
      %172 = sbr.rel (0) target = $region33
    $region32: #{tpu_custom_call.1} parent=1 // pred_region
      %174 = vsyncadd [#allocation3], 0
      %s176 = sshll.u32 [#allocation2], 4
      %s177 = int_to_ptr.vmem [resolvable:$true] %s176
      %s178 = sshll.u32 %s7, 4
      %s179 = int_to_ptr.hbm [resolvable:$true] %s178
      %181 = dma.vmem_to_hbm [thread:$0]  %s177, 32, %s179, [#allocation3]
    $region33: #{tpu_custom_call.1} parent=1 // pred_fallthru
      _
    // Predicated region
    $region34: #{tpu_custom_call.1} parent=1 // pred_check
      _
    $region35: #{tpu_custom_call.1} parent=1 // pred_check_branch
      %183 = sbr.rel (0) target = $region37
    $region36: #{tpu_custom_call.1} parent=1 // pred_region
      %185 = dma.done [#allocation3], 32
    $region37: #{tpu_custom_call.1} parent=1 // pred_fallthru
      _
    %186 = vsyncpa [#allocation3], 1

</llo_original>
